<compile_context>
chip_gen: v7x
topology: tpu7x:2x2x1
jax: 0.10.0
libtpu: 0.0.40
codegen_flags: <defaults>
</compile_context>

<pallas_src>
from functools import partial

import jax
import jax.numpy as jnp
from jax.experimental import pallas as pl
from jax.experimental.pallas import tpu as pltpu

LANE = 128


def _round_up(x, m):
    return ((x + m - 1) // m) * m


# ----------------------------- fused Pallas kernel -----------------------------

def _fused_forward_kernel(*refs, n_base: int, num_instances: int):
    """Entire BaseMLP forward for one batch tile, fully in VMEM.

    refs = (x_ref, [w_i, b_i] * n_base, w1_cat, b1_cat, w2_blk, b2_cat, o_ref)
      x_ref : (TB, N, D_pad)   -- one tile of bags, all instances
      o_ref : (TB, C_pad)      -- lane-dense output slab (all task heads)
    """
    x_ref = refs[0]
    o_ref = refs[-1]
    TB, N, D = x_ref.shape

    # flatten (bag, instance) -> rows; feature dim stays on lanes
    h = x_ref[...].reshape(TB * N, D)

    # base_network: stack of Linear + ReLU, weights resident in VMEM
    idx = 1
    for _ in range(n_base):
        w = refs[idx][...]
        b = refs[idx + 1][...]
        idx += 2
        h = jnp.maximum(
            jnp.dot(h, w, preferred_element_type=jnp.float32) + b, 0.0)

    # aggregate: mean over the instance axis (MeanMLP semantics), divide by the
    # TRUE number of instances (instance axis is never padded).
    Dh = h.shape[-1]
    agg = jnp.sum(h.reshape(TB, N, Dh), axis=1) * (1.0 / float(num_instances))

    # fused task heads: Linear -> ReLU -> (Dropout = identity in eval) -> Linear
    # TODO(synk): training-mode dropout (pltpu.prng_*) not implemented; eval-mode
    # identity matches model.eval() semantics.
    w1c = refs[idx][...]
    b1c = refs[idx + 1][...]
    w2b = refs[idx + 2][...]
    b2c = refs[idx + 3][...]
    t = jnp.maximum(
        jnp.dot(agg, w1c, preferred_element_type=jnp.float32) + b1c, 0.0)
    y = jnp.dot(t, w2b, preferred_element_type=jnp.float32) + b2c
    o_ref[...] = y.astype(o_ref.dtype)


# ----------------------------- parameter init -----------------------------

def xavier_uniform(key, fan_in, fan_out):
    # torch.nn.init.xavier_uniform_ bound; stored as (in, out) (transposed).
    bound = (6.0 / (fan_in + fan_out)) ** 0.5
    return jax.random.uniform(key, (fan_in, fan_out), jnp.float32, -bound, bound)


def init_base_mlp_params(key, input_dim, hidden_dim, output_dims_dict,
                         autoencoder_layer_sizes):
    """Unpadded parameters, identical semantics to the PyTorch module."""
    params = {"base": [], "heads": {}}
    if autoencoder_layer_sizes:
        for fan_in, fan_out in zip(autoencoder_layer_sizes[:-1],
                                   autoencoder_layer_sizes[1:]):
            key, sub = jax.random.split(key)
            w = xavier_uniform(sub, fan_in, fan_out)
            b = jnp.zeros((1, fan_out), jnp.float32)
            params["base"].append((w, b))
        in_agg = autoencoder_layer_sizes[-1]
    else:
        in_agg = input_dim
    for task_name, num_classes in output_dims_dict.items():
        key, k1, k2 = jax.random.split(key, 3)
        w1 = xavier_uniform(k1, in_agg, hidden_dim)
        b1 = jnp.zeros((1, hidden_dim), jnp.float32)
        w2 = xavier_uniform(k2, hidden_dim, num_classes)
        b2 = jnp.zeros((1, num_classes), jnp.float32)
        params["heads"][task_name] = (w1, b1, w2, b2)
    return params


def prepare_kernel_params(params, input_dim, hidden_dim, output_dims_dict,
                          autoencoder_layer_sizes):
    """Pad feature dims to 128 lanes and fuse the task heads:
    w1's concatenated along the hidden axis, w2's arranged block-diagonally so
    all heads come out of one lane-dense (B, C_pad) output slab."""
    def pad2(a, rows, cols):
        return jnp.pad(a, ((0, rows - a.shape[0]), (0, cols - a.shape[1])))

    base_padded = []
    for (w, b) in params["base"]:
        fi, fo = w.shape
        fi_p, fo_p = _round_up(fi, LANE), _round_up(fo, LANE)
        base_padded.append((pad2(w, fi_p, fo_p), pad2(b, 1, fo_p)))

    in_agg = autoencoder_layer_sizes[-1] if autoencoder_layer_sizes else input_dim
    in_agg_p = _round_up(in_agg, LANE)
    h_p = _round_up(hidden_dim, LANE)
    task_names = list(output_dims_dict.keys())
    n_tasks = len(task_names)
    c_total = sum(output_dims_dict.values())
    c_pad = _round_up(max(c_total, 1), LANE)

    w1_cat = jnp.zeros((in_agg_p, n_tasks * h_p), jnp.float32)
    b1_cat = jnp.zeros((1, n_tasks * h_p), jnp.float32)
    w2_blk = jnp.zeros((n_tasks * h_p, c_pad), jnp.float32)
    b2_cat = jnp.zeros((1, c_pad), jnp.float32)
    offsets = {}
    off = 0
    for t, name in enumerate(task_names):
        w1, b1, w2, b2 = params["heads"][name]
        c = output_dims_dict[name]
        w1_cat = w1_cat.at[:in_agg, t * h_p:t * h_p + hidden_dim].set(w1)
        b1_cat = b1_cat.at[:, t * h_p:t * h_p + hidden_dim].set(b1)
        w2_blk = w2_blk.at[t * h_p:t * h_p + hidden_dim, off:off + c].set(w2)
        b2_cat = b2_cat.at[:, off:off + c].set(b2)
        offsets[name] = (off, c)
        off += c

    return {
        "base": base_padded,
        "w1_cat": w1_cat, "b1_cat": b1_cat,
        "w2_blk": w2_blk, "b2_cat": b2_cat,
        "offsets": offsets,
        "in_pad": _round_up(input_dim, LANE),
        "c_pad": c_pad,
    }


# ----------------------------- forward pass (single pallas_call) ----------------

def base_mlp_forward(kparams, x, *, batch_tile=8):
    """x: (batch, num_instances, input_dim) -> dict task_name -> (batch, n_cls)."""
    B, N, D = x.shape
    D_pad = kparams["in_pad"]
    C_pad = kparams["c_pad"]
    B_pad = _round_up(B, batch_tile)

    x_pad = jnp.pad(x.astype(jnp.float32),
                    ((0, B_pad - B), (0, 0), (0, D_pad - D)))

    n_base = len(kparams["base"])
    flat_weights = []
    in_specs = [pl.BlockSpec((batch_tile, N, D_pad), lambda i: (i, 0, 0))]
    for (w, b) in kparams["base"]:
        flat_weights += [w, b]
        in_specs += [pl.BlockSpec(w.shape, lambda i: (0, 0)),
                     pl.BlockSpec(b.shape, lambda i: (0, 0))]
    for name in ("w1_cat", "b1_cat", "w2_blk", "b2_cat"):
        a = kparams[name]
        flat_weights.append(a)
        in_specs.append(pl.BlockSpec(a.shape, lambda i: (0, 0)))

    # advisory cost estimate for the XLA scheduler
    flops = 0
    for (w, _) in kparams["base"]:
        flops += 2 * B_pad * N * w.shape[0] * w.shape[1]
    flops += 2 * B_pad * kparams["w1_cat"].shape[0] * kparams["w1_cat"].shape[1]
    flops += 2 * B_pad * kparams["w2_blk"].shape[0] * kparams["w2_blk"].shape[1]
    bytes_accessed = (x_pad.size + sum(a.size for a in flat_weights)
                      + B_pad * C_pad) * 4
    grid = (B_pad // batch_tile,)

    out = pl.pallas_call(
        partial(_fused_forward_kernel, n_base=n_base, num_instances=N),
        out_shape=jax.ShapeDtypeStruct((B_pad, C_pad), jnp.float32),
        grid=grid,
        in_specs=in_specs,
        out_specs=pl.BlockSpec((batch_tile, C_pad), lambda i: (i, 0)),
        compiler_params=pltpu.CompilerParams(
            dimension_semantics=("parallel",)),
        cost_estimate=pl.CostEstimate(flops=int(flops), transcendentals=0,
                                      bytes_accessed=int(bytes_accessed)),
    )(x_pad, *flat_weights)

    return {name: out[:B, off:off + c]
            for name, (off, c) in kparams["offsets"].items()}


# ----------------------------- reference (pure JAX) -----------------------------

def base_mlp_forward_ref(params, x):
    B, N, D = x.shape
    h = x.reshape(B * N, D)
    for (w, b) in params["base"]:
        h = jnp.maximum(h @ w + b, 0.0)
    h = h.reshape(B, N, -1)
    agg = jnp.mean(h, axis=1)
    outs = {}
    for name, (w1, b1, w2, b2) in params["heads"].items():
        t = jnp.maximum(agg @ w1 + b1, 0.0)
        outs[name] = t @ w2 + b2
    return outs


# ----------------------------- main -----------------------------

if __name__ == "__main__":
    key = jax.random.PRNGKey(0)

    # small shapes consistent with the module
    batch = 2
    num_instances = 8
    input_dim = 16
    hidden_dim = 32
    autoencoder_layer_sizes = [input_dim, 32, 8]        # base_network layer sizes
    output_dims_dict = {"task_a": 3, "task_b": 5}

    key, pkey, xkey = jax.random.split(key, 3)
    params = init_base_mlp_params(pkey, input_dim, hidden_dim,
                                  output_dims_dict, autoencoder_layer_sizes)
    kparams = prepare_kernel_params(params, input_dim, hidden_dim,
                                    output_dims_dict, autoencoder_layer_sizes)
    x = jax.random.normal(xkey, (batch, num_instances, input_dim), jnp.float32)

    outs = base_mlp_forward(kparams, x)
    outs = jax.tree_util.tree_map(jax.block_until_ready, outs)

    # correctness check vs pure-JAX reference (unpadded params)
    refs = base_mlp_forward_ref(params, x)
    for name in output_dims_dict:
        assert outs[name].shape == (batch, output_dims_dict[name])
        err = jnp.max(jnp.abs(outs[name] - refs[name]))
        assert err < 1e-4, f"mismatch on {name}: {err}"

    print("KERNEL_OK")
</pallas_src>

<mosaic_0001>
module attributes {stable_mosaic.version = 11 : i64} {
  func.func @_fused_forward_kernel(%arg0: i32, %arg1: memref<8x8x128xf32, #tpu.memory_space<vmem>>, %arg2: memref<128x128xf32, #tpu.memory_space<vmem>>, %arg3: memref<1x128xf32, #tpu.memory_space<vmem>>, %arg4: memref<128x128xf32, #tpu.memory_space<vmem>>, %arg5: memref<1x128xf32, #tpu.memory_space<vmem>>, %arg6: memref<128x256xf32, #tpu.memory_space<vmem>>, %arg7: memref<1x256xf32, #tpu.memory_space<vmem>>, %arg8: memref<256x128xf32, #tpu.memory_space<vmem>>, %arg9: memref<1x128xf32, #tpu.memory_space<vmem>>, %arg10: memref<8x128xf32, #tpu.memory_space<vmem>>) attributes {dimension_semantics = [#tpu.dimension_semantics<parallel>], iteration_bounds = array<i64: 1>, scalar_prefetch = 0 : i64, scratch_operands = 0 : i64, tpu.core_type = #tpu.core_type<tc>, window_params = [{transform_indices = @transform_0, window_bounds = array<i64: 8, 8, 128>}, {pipeline_mode = #tpu.pipeline_mode<synchronous>, transform_indices = @transform_1, window_bounds = array<i64: 128, 128>}, {pipeline_mode = #tpu.pipeline_mode<synchronous>, transform_indices = @transform_2, window_bounds = array<i64: 1, 128>}, {pipeline_mode = #tpu.pipeline_mode<synchronous>, transform_indices = @transform_3, window_bounds = array<i64: 128, 128>}, {pipeline_mode = #tpu.pipeline_mode<synchronous>, transform_indices = @transform_4, window_bounds = array<i64: 1, 128>}, {pipeline_mode = #tpu.pipeline_mode<synchronous>, transform_indices = @transform_5, window_bounds = array<i64: 128, 256>}, {pipeline_mode = #tpu.pipeline_mode<synchronous>, transform_indices = @transform_6, window_bounds = array<i64: 1, 256>}, {pipeline_mode = #tpu.pipeline_mode<synchronous>, transform_indices = @transform_7, window_bounds = array<i64: 256, 128>}, {pipeline_mode = #tpu.pipeline_mode<synchronous>, transform_indices = @transform_8, window_bounds = array<i64: 1, 128>}, {transform_indices = @transform_9, window_bounds = array<i64: 8, 128>}]} {
    %c0 = arith.constant 0 : index
    %c0_0 = arith.constant 0 : index
    %c0_1 = arith.constant 0 : index
    %0 = vector.load %arg1[%c0, %c0_0, %c0_1] : memref<8x8x128xf32, #tpu.memory_space<vmem>>, vector<8x8x128xf32>
    %1 = vector.shape_cast %0 : vector<8x8x128xf32> to vector<64x128xf32>
    %c0_2 = arith.constant 0 : index
    %c0_3 = arith.constant 0 : index
    %2 = vector.load %arg2[%c0_2, %c0_3] : memref<128x128xf32, #tpu.memory_space<vmem>>, vector<128x128xf32>
    %c0_4 = arith.constant 0 : index
    %c0_5 = arith.constant 0 : index
    %3 = vector.load %arg3[%c0_4, %c0_5] : memref<1x128xf32, #tpu.memory_space<vmem>>, vector<1x128xf32>
    %cst = arith.constant dense<0.000000e+00> : vector<64x128xf32>
    %4 = tpu.matmul %1, %2, %cst {dimension_numbers = #tpu.dot_dimension_numbers<[1], [0], [0], [1], [0, 0, 1, 1], [], []>} : vector<64x128xf32>, vector<128x128xf32>, vector<64x128xf32> -> vector<64x128xf32>
    %5 = vector.broadcast %3 : vector<1x128xf32> to vector<64x128xf32>
    %6 = arith.addf %4, %5 : vector<64x128xf32>
    %cst_6 = arith.constant 0.000000e+00 : f32
    %7 = vector.broadcast %cst_6 : f32 to vector<64x128xf32>
    %8 = arith.maximumf %6, %7 : vector<64x128xf32>
    %c0_7 = arith.constant 0 : index
    %c0_8 = arith.constant 0 : index
    %9 = vector.load %arg4[%c0_7, %c0_8] : memref<128x128xf32, #tpu.memory_space<vmem>>, vector<128x128xf32>
    %c0_9 = arith.constant 0 : index
    %c0_10 = arith.constant 0 : index
    %10 = vector.load %arg5[%c0_9, %c0_10] : memref<1x128xf32, #tpu.memory_space<vmem>>, vector<1x128xf32>
    %cst_11 = arith.constant dense<0.000000e+00> : vector<64x128xf32>
    %11 = tpu.matmul %8, %9, %cst_11 {dimension_numbers = #tpu.dot_dimension_numbers<[1], [0], [0], [1], [0, 0, 1, 1], [], []>} : vector<64x128xf32>, vector<128x128xf32>, vector<64x128xf32> -> vector<64x128xf32>
    %12 = vector.broadcast %10 : vector<1x128xf32> to vector<64x128xf32>
    %13 = arith.addf %11, %12 : vector<64x128xf32>
    %cst_12 = arith.constant 0.000000e+00 : f32
    %14 = vector.broadcast %cst_12 : f32 to vector<64x128xf32>
    %15 = arith.maximumf %13, %14 : vector<64x128xf32>
    %16 = vector.shape_cast %15 : vector<64x128xf32> to vector<8x8x128xf32>
    %cst_13 = arith.constant dense<0.000000e+00> : vector<8x128xf32>
    %17 = vector.multi_reduction <add>, %16, %cst_13 [1] : vector<8x8x128xf32> to vector<8x128xf32>
    %cst_14 = arith.constant 1.250000e-01 : f32
    %18 = vector.broadcast %cst_14 : f32 to vector<8x128xf32>
    %19 = arith.mulf %17, %18 : vector<8x128xf32>
    %c0_15 = arith.constant 0 : index
    %c0_16 = arith.constant 0 : index
    %20 = vector.load %arg6[%c0_15, %c0_16] : memref<128x256xf32, #tpu.memory_space<vmem>>, vector<128x256xf32>
    %c0_17 = arith.constant 0 : index
    %c0_18 = arith.constant 0 : index
    %21 = vector.load %arg7[%c0_17, %c0_18] : memref<1x256xf32, #tpu.memory_space<vmem>>, vector<1x256xf32>
    %c0_19 = arith.constant 0 : index
    %c0_20 = arith.constant 0 : index
    %22 = vector.load %arg8[%c0_19, %c0_20] : memref<256x128xf32, #tpu.memory_space<vmem>>, vector<256x128xf32>
    %c0_21 = arith.constant 0 : index
    %c0_22 = arith.constant 0 : index
    %23 = vector.load %arg9[%c0_21, %c0_22] : memref<1x128xf32, #tpu.memory_space<vmem>>, vector<1x128xf32>
    %cst_23 = arith.constant dense<0.000000e+00> : vector<8x256xf32>
    %24 = tpu.matmul %19, %20, %cst_23 {dimension_numbers = #tpu.dot_dimension_numbers<[1], [0], [0], [1], [0, 0, 1, 1], [], []>} : vector<8x128xf32>, vector<128x256xf32>, vector<8x256xf32> -> vector<8x256xf32>
    %25 = vector.broadcast %21 : vector<1x256xf32> to vector<8x256xf32>
    %26 = arith.addf %24, %25 : vector<8x256xf32>
    %cst_24 = arith.constant 0.000000e+00 : f32
    %27 = vector.broadcast %cst_24 : f32 to vector<8x256xf32>
    %28 = arith.maximumf %26, %27 : vector<8x256xf32>
    %cst_25 = arith.constant dense<0.000000e+00> : vector<8x128xf32>
    %29 = tpu.matmul %28, %22, %cst_25 {dimension_numbers = #tpu.dot_dimension_numbers<[1], [0], [0], [1], [0, 0, 1, 1], [], []>} : vector<8x256xf32>, vector<256x128xf32>, vector<8x128xf32> -> vector<8x128xf32>
    %30 = vector.broadcast %23 : vector<1x128xf32> to vector<8x128xf32>
    %31 = arith.addf %29, %30 : vector<8x128xf32>
    %c0_26 = arith.constant 0 : index
    %c0_27 = arith.constant 0 : index
    %32 = vector.load %arg10[%c0_26, %c0_27] : memref<8x128xf32, #tpu.memory_space<vmem>>, vector<8x128xf32>
    tpu.vector_store %arg10[%c0_26, %c0_27], %31 {strides = array<i32>} : memref<8x128xf32, #tpu.memory_space<vmem>>, vector<8x128xf32>,
    return
  }
  func.func @transform_0(%arg0: i32) -> (i32, i32, i32) {
    %c0_i32 = arith.constant 0 : i32
    %c0_i32_0 = arith.constant 0 : i32
    %c0_i32_1 = arith.constant 0 : i32
    return %arg0, %c0_i32, %c0_i32_0 : i32, i32, i32
  }
  func.func @transform_1(%arg0: i32) -> (i32, i32) {
    %c0_i32 = arith.constant 0 : i32
    %c0_i32_0 = arith.constant 0 : i32
    %c0_i32_1 = arith.constant 0 : i32
    return %c0_i32, %c0_i32_0 : i32, i32
  }
  func.func @transform_2(%arg0: i32) -> (i32, i32) {
    %c0_i32 = arith.constant 0 : i32
    %c0_i32_0 = arith.constant 0 : i32
    %c0_i32_1 = arith.constant 0 : i32
    return %c0_i32, %c0_i32_0 : i32, i32
  }
  func.func @transform_3(%arg0: i32) -> (i32, i32) {
    %c0_i32 = arith.constant 0 : i32
    %c0_i32_0 = arith.constant 0 : i32
    %c0_i32_1 = arith.constant 0 : i32
    return %c0_i32, %c0_i32_0 : i32, i32
  }
  func.func @transform_4(%arg0: i32) -> (i32, i32) {
    %c0_i32 = arith.constant 0 : i32
    %c0_i32_0 = arith.constant 0 : i32
    %c0_i32_1 = arith.constant 0 : i32
    return %c0_i32, %c0_i32_0 : i32, i32
  }
  func.func @transform_5(%arg0: i32) -> (i32, i32) {
    %c0_i32 = arith.constant 0 : i32
    %c0_i32_0 = arith.constant 0 : i32
    %c0_i32_1 = arith.constant 0 : i32
    return %c0_i32, %c0_i32_0 : i32, i32
  }
  func.func @transform_6(%arg0: i32) -> (i32, i32) {
    %c0_i32 = arith.constant 0 : i32
    %c0_i32_0 = arith.constant 0 : i32
    %c0_i32_1 = arith.constant 0 : i32
    return %c0_i32, %c0_i32_0 : i32, i32
  }
  func.func @transform_7(%arg0: i32) -> (i32, i32) {
    %c0_i32 = arith.constant 0 : i32
    %c0_i32_0 = arith.constant 0 : i32
    %c0_i32_1 = arith.constant 0 : i32
    return %c0_i32, %c0_i32_0 : i32, i32
  }
  func.func @transform_8(%arg0: i32) -> (i32, i32) {
    %c0_i32 = arith.constant 0 : i32
    %c0_i32_0 = arith.constant 0 : i32
    %c0_i32_1 = arith.constant 0 : i32
    return %c0_i32, %c0_i32_0 : i32, i32
  }
  func.func @transform_9(%arg0: i32) -> (i32, i32) {
    %c0_i32 = arith.constant 0 : i32
    %c0_i32_0 = arith.constant 0 : i32
    return %arg0, %c0_i32 : i32, i32
  }
}

</mosaic_0001>

<llo_original>
// kernel: tpu_custom_call.1
$region0: #{tpu_custom_call.1}
  #allocation0 [shape = 'u32[]', space=smem, size = 0x4, offset = 0x4, fixed_abs, tag = 'smem constant byte address 0x4 - core index']
  #allocation1 [shape = 'u32[144,128]{1,0:T(1,128)}', space=vmem, size = 0x12000, scoped, tag = 'internal scratch']
  %s0 = inlined_call_operand.hbm [shape: f32[8,8,128], index: 0, kind: input, shape index: {}]
  %s1 = inlined_call_operand.hbm [shape: f32[128,128], index: 1, kind: input, shape index: {}]
  %s2 = inlined_call_operand.vmem [shape: f32[1,128], index: 2, kind: input, shape index: {}]
  %s3 = inlined_call_operand.hbm [shape: f32[128,128], index: 3, kind: input, shape index: {}]
  %s4 = inlined_call_operand.vmem [shape: f32[1,128], index: 4, kind: input, shape index: {}]
  %s5 = inlined_call_operand.hbm [shape: f32[128,256], index: 5, kind: input, shape index: {}]
  %s6 = inlined_call_operand.vmem [shape: f32[1,256], index: 6, kind: input, shape index: {}]
  %s7 = inlined_call_operand.hbm [shape: f32[256,128], index: 7, kind: input, shape index: {}]
  %s8 = inlined_call_operand.vmem [shape: f32[1,128], index: 8, kind: input, shape index: {}]
  %s9 = inlined_call_operand.hbm [shape: f32[8,128], index: 9, kind: output, shape index: {}]
  %s10 = sld [smem:[#allocation0]]
  $region66: #{tpu_custom_call.1} parent=0
    _
  %s12 = ssub.s32 1, %s10
  %s13 = scalar_select 0, %s12, %s10
  $region1: #{tpu_custom_call.1} parent=0
    #allocation2 [shape = 'u8[32768]{0}', space=vmem, size = 0x8000, scoped, tag = 'input window, operand 0, single buffered']
    #allocation3 [shape = 's32[1]{0}', space=sflag, size = 0x4, scoped, tag = 'scoped memory for tpu_custom_call.1']
    #allocation4 [shape = 's32[1]{0}', space=sflag, size = 0x4, scoped, tag = 'scoped memory for tpu_custom_call.1']
    #allocation5 [shape = 'u8[65536]{0}', space=vmem, size = 0x10000, scoped, tag = 'input window, operand 1, single buffered']
    #allocation6 [shape = 's32[1]{0}', space=sflag, size = 0x4, scoped, tag = 'scoped memory for tpu_custom_call.1']
    #allocation7 [shape = 'u8[65536]{0}', space=vmem, size = 0x10000, scoped, tag = 'input window, operand 3, single buffered']
    #allocation8 [shape = 'u8[131072]{0}', space=vmem, size = 0x20000, scoped, tag = 'input window, operand 5, single buffered']
    #allocation9 [shape = 's32[1]{0}', space=sflag, size = 0x4, scoped, tag = 'scoped memory for tpu_custom_call.1']
    #allocation10 [shape = 'u8[131072]{0}', space=vmem, size = 0x20000, scoped, tag = 'input window, operand 7, single buffered']
    #allocation11 [shape = 'u8[4096]{0}', space=vmem, size = 0x1000, scoped, tag = 'output window, operand 0, single buffered']
    %14 = vsyncpa [#allocation3], 0
    %15 = vsyncpa [#allocation6], 0
    %16 = vsyncpa [#allocation9], 0
    %17 = vsyncpa [#allocation4], 0
    // Predicated region
    $region2: #{tpu_custom_call.1} parent=1 // pred_check
      _
    $region3: #{tpu_custom_call.1} parent=1 // pred_check_branch
      %19 = sbr.rel (0) target = $region5
    $region4: #{tpu_custom_call.1} parent=1 // pred_region
      %s21 = ssub.s32 1024, 1024
      %22 = vsyncadd [#allocation3], %s21
      %s23 = sshll.u32 [#allocation2], 4
      %s24 = int_to_ptr.vmem [resolvable:$true] %s23
      %29 = dma.hbm_to_vmem [thread:$0]  %s0, 1024, %s24, [#allocation3], 128, 128, 8
    $region5: #{tpu_custom_call.1} parent=1 // pred_fallthru
      _
    // Predicated region
    $region6: #{tpu_custom_call.1} parent=1 // pred_check
      _
    $region7: #{tpu_custom_call.1} parent=1 // pred_check_branch
      %31 = sbr.rel (0) target = $region9
    $region8: #{tpu_custom_call.1} parent=1 // pred_region
      %s33 = ssub.s32 2048, 2048
      %34 = vsyncadd [#allocation6], %s33
      %s35 = sshll.u32 [#allocation5], 4
      %s36 = int_to_ptr.vmem [resolvable:$true] %s35
      %41 = dma.hbm_to_vmem [thread:$0]  %s1, 2048, %s36, [#allocation6], 128, 128, 8
    $region9: #{tpu_custom_call.1} parent=1 // pred_fallthru
      _
    // Predicated region
    $region10: #{tpu_custom_call.1} parent=1 // pred_check
      _
    $region11: #{tpu_custom_call.1} parent=1 // pred_check_branch
      %43 = sbr.rel (0) target = $region13
    $region12: #{tpu_custom_call.1} parent=1 // pred_region
      _
    $region13: #{tpu_custom_call.1} parent=1 // pred_fallthru
      _
    // Predicated region
    $region14: #{tpu_custom_call.1} parent=1 // pred_check
      _
    $region15: #{tpu_custom_call.1} parent=1 // pred_check_branch
      %45 = sbr.rel (0) target = $region17
    $region16: #{tpu_custom_call.1} parent=1 // pred_region
      %s47 = ssub.s32 2048, 2048
      %48 = vsyncadd [#allocation6], %s47
      %s49 = sshll.u32 [#allocation7], 4
      %s50 = int_to_ptr.vmem [resolvable:$true] %s49
      %55 = dma.hbm_to_vmem [thread:$0]  %s3, 2048, %s50, [#allocation6], 128, 128, 8
    $region17: #{tpu_custom_call.1} parent=1 // pred_fallthru
      _
    // Predicated region
    $region18: #{tpu_custom_call.1} parent=1 // pred_check
      _
    $region19: #{tpu_custom_call.1} parent=1 // pred_check_branch
      %57 = sbr.rel (0) target = $region21
    $region20: #{tpu_custom_call.1} parent=1 // pred_region
      _
    $region21: #{tpu_custom_call.1} parent=1 // pred_fallthru
      _
    // Predicated region
    $region22: #{tpu_custom_call.1} parent=1 // pred_check
      _
    $region23: #{tpu_custom_call.1} parent=1 // pred_check_branch
      %59 = sbr.rel (0) target = $region25
    $region24: #{tpu_custom_call.1} parent=1 // pred_region
      %s61 = ssub.s32 4096, 4096
      %62 = vsyncadd [#allocation9], %s61
      %s63 = sshll.u32 [#allocation8], 4
      %s64 = int_to_ptr.vmem [resolvable:$true] %s63
      %69 = dma.hbm_to_vmem [thread:$0]  %s5, 4096, %s64, [#allocation9], 256, 256, 16
    $region25: #{tpu_custom_call.1} parent=1 // pred_fallthru
      _
    // Predicated region
    $region26: #{tpu_custom_call.1} parent=1 // pred_check
      _
    $region27: #{tpu_custom_call.1} parent=1 // pred_check_branch
      %71 = sbr.rel (0) target = $region29
    $region28: #{tpu_custom_call.1} parent=1 // pred_region
      _
    $region29: #{tpu_custom_call.1} parent=1 // pred_fallthru
      _
    // Predicated region
    $region30: #{tpu_custom_call.1} parent=1 // pred_check
      _
    $region31: #{tpu_custom_call.1} parent=1 // pred_check_branch
      %73 = sbr.rel (0) target = $region33
    $region32: #{tpu_custom_call.1} parent=1 // pred_region
      %s75 = ssub.s32 4096, 4096
      %76 = vsyncadd [#allocation9], %s75
      %s77 = sshll.u32 [#allocation10], 4
      %s78 = int_to_ptr.vmem [resolvable:$true] %s77
      %83 = dma.hbm_to_vmem [thread:$0]  %s7, 4096, %s78, [#allocation9], 128, 128, 8
    $region33: #{tpu_custom_call.1} parent=1 // pred_fallthru
      _
    // Predicated region
    $region34: #{tpu_custom_call.1} parent=1 // pred_check
      _
    $region35: #{tpu_custom_call.1} parent=1 // pred_check_branch
      %85 = sbr.rel (0) target = $region37
    $region36: #{tpu_custom_call.1} parent=1 // pred_region
      _
    $region37: #{tpu_custom_call.1} parent=1 // pred_fallthru
      _
    // Predicated region
    $region38: #{tpu_custom_call.1} parent=1 // pred_check
      _
    $region39: #{tpu_custom_call.1} parent=1 // pred_check_branch
      %87 = sbr.rel (0) target = $region41
    $region40: #{tpu_custom_call.1} parent=1 // pred_region
      %88 = dma.done [#allocation3], 1024
    $region41: #{tpu_custom_call.1} parent=1 // pred_fallthru
      _
    // Predicated region
    $region42: #{tpu_custom_call.1} parent=1 // pred_check
      _
    $region43: #{tpu_custom_call.1} parent=1 // pred_check_branch
      %90 = sbr.rel (0) target = $region45
    $region44: #{tpu_custom_call.1} parent=1 // pred_region
      %91 = dma.done [#allocation6], 2048
    $region45: #{tpu_custom_call.1} parent=1 // pred_fallthru
      _
    // Predicated region
    $region46: #{tpu_custom_call.1} parent=1 // pred_check
      _
    $region47: #{tpu_custom_call.1} parent=1 // pred_check_branch
      %93 = sbr.rel (0) target = $region49
    $region48: #{tpu_custom_call.1} parent=1 // pred_region
      %94 = dma.done [#allocation6], 2048
    $region49: #{tpu_custom_call.1} parent=1 // pred_fallthru
      _
    // Predicated region
    $region50: #{tpu_custom_call.1} parent=1 // pred_check
      _
    $region51: #{tpu_custom_call.1} parent=1 // pred_check_branch
      %96 = sbr.rel (0) target = $region53
    $region52: #{tpu_custom_call.1} parent=1 // pred_region
      %97 = dma.done [#allocation9], 4096
    $region53: #{tpu_custom_call.1} parent=1 // pred_fallthru
      _
    // Predicated region
    $region54: #{tpu_custom_call.1} parent=1 // pred_check
      _
    $region55: #{tpu_custom_call.1} parent=1 // pred_check_branch
      %99 = sbr.rel (0) target = $region57
    $region56: #{tpu_custom_call.1} parent=1 // pred_region
      %100 = dma.done [#allocation9], 4096
    $region57: #{tpu_custom_call.1} parent=1 // pred_fallthru
      _
    %v101 = vld [vmem:[#allocation2] sm:$0xff]
    %v102 = vld [vmem:[#allocation2 + $0x8] sm:$0xff]
    %v103 = vld [vmem:[#allocation2 + $0x10] sm:$0xff]
    %v104 = vld [vmem:[#allocation2 + $0x18] sm:$0xff]
    %v105 = vld [vmem:[#allocation2 + $0x20] sm:$0xff]
    %v106 = vld [vmem:[#allocation2 + $0x28] sm:$0xff]
    %v107 = vld [vmem:[#allocation2 + $0x30] sm:$0xff]
    %v108 = vld [vmem:[#allocation2 + $0x38] sm:$0xff]
    %v109 = vld [vmem:[#allocation5] sm:$0xff]
    %v110 = vld [vmem:[#allocation5 + $0x8] sm:$0xff]
    %v111 = vld [vmem:[#allocation5 + $0x10] sm:$0xff]
    %v112 = vld [vmem:[#allocation5 + $0x18] sm:$0xff]
    %v113 = vld [vmem:[#allocation5 + $0x20] sm:$0xff]
    %v114 = vld [vmem:[#allocation5 + $0x28] sm:$0xff]
    %v115 = vld [vmem:[#allocation5 + $0x30] sm:$0xff]
    %v116 = vld [vmem:[#allocation5 + $0x38] sm:$0xff]
    %v117 = vld [vmem:[#allocation5 + $0x40] sm:$0xff]
    %v118 = vld [vmem:[#allocation5 + $0x48] sm:$0xff]
    %v119 = vld [vmem:[#allocation5 + $0x50] sm:$0xff]
    %v120 = vld [vmem:[#allocation5 + $0x58] sm:$0xff]
    %v121 = vld [vmem:[#allocation5 + $0x60] sm:$0xff]
    %v122 = vld [vmem:[#allocation5 + $0x68] sm:$0xff]
    %v123 = vld [vmem:[#allocation5 + $0x70] sm:$0xff]
    %v124 = vld [vmem:[#allocation5 + $0x78] sm:$0xff]
    %v125 = vld [vmem:[%s2] sm:$0x1]
    %v127 = vlaneseq
    %v128 = vshrl.u32 %v127, 7
    %v129 = vsub.s32 0, %v128
    %v130 = vrot.slane %v125, %v129
    %132 = vmatprep.subr.mxu0 0.0
    %133 = vmatpush1.msra.mxu0 %v109
    %134 = vmatprep.subr.mxu0 0.0
    %135 = vmatpush1.msra.mxu0 %v110
    %136 = vmatprep.subr.mxu0 0.0
    %137 = vmatpush1.msra.mxu0 %v111
    %138 = vmatprep.subr.mxu0 0.0
    %139 = vmatpush1.msra.mxu0 %v112
    %140 = vmatprep.subr.mxu0 0.0
    %141 = vmatpush1.msra.mxu0 %v113
    %142 = vmatprep.subr.mxu0 0.0
    %143 = vmatpush1.msra.mxu0 %v114
    %144 = vmatprep.subr.mxu0 0.0
    %145 = vmatpush1.msra.mxu0 %v115
    %146 = vmatprep.subr.mxu0 0.0
    %147 = vmatpush1.msra.mxu0 %v116
    %148 = vmatprep.subr.mxu0 0.0
    %149 = vmatpush1.msra.mxu0 %v117
    %150 = vmatprep.subr.mxu0 0.0
    %151 = vmatpush1.msra.mxu0 %v118
    %152 = vmatprep.subr.mxu0 0.0
    %153 = vmatpush1.msra.mxu0 %v119
    %154 = vmatprep.subr.mxu0 0.0
    %155 = vmatpush1.msra.mxu0 %v120
    %156 = vmatprep.subr.mxu0 0.0
    %157 = vmatpush1.msra.mxu0 %v121
    %158 = vmatprep.subr.mxu0 0.0
    %159 = vmatpush1.msra.mxu0 %v122
    %160 = vmatprep.subr.mxu0 0.0
    %161 = vmatpush1.msra.mxu0 %v123
    %162 = vmatprep.subr.mxu0 0.0
    %163 = vmatpush1.msra.mxu0 %v124
    %164 = vmatprep.subr.mxu0 0.0
    %165 = vmatpush1.msra.mxu0 0.0
    %166 = vmatprep.subr.mxu0 0.0
    %167 = vmatpush1.msra.mxu0 0.0
    %168 = vmatprep.subr.mxu0 0.0
    %169 = vmatpush1.msra.mxu0 0.0
    %170 = vmatprep.subr.mxu0 0.0
    %171 = vmatpush1.msra.mxu0 0.0
    %172 = vmatprep.subr.mxu0 0.0
    %173 = vmatpush1.msra.mxu0 0.0
    %174 = vmatprep.subr.mxu0 0.0
    %175 = vmatpush1.msra.mxu0 0.0
    %176 = vmatprep.subr.mxu0 0.0
    %177 = vmatpush1.msra.mxu0 0.0
    %178 = vmatprep.subr.mxu0 0.0
    %179 = vmatpush1.msra.mxu0 0.0
    %180 = vmatprep.subr.mxu0 0.0
    %181 = vmatpush1.msra.mxu0 0.0
    %182 = vmatprep.subr.mxu0 0.0
    %183 = vmatpush1.msra.mxu0 0.0
    %184 = vmatprep.subr.mxu0 0.0
    %185 = vmatpush1.msra.mxu0 0.0
    %186 = vmatprep.subr.mxu0 0.0
    %187 = vmatpush1.msra.mxu0 0.0
    %188 = vmatprep.subr.mxu0 0.0
    %189 = vmatpush1.msra.mxu0 0.0
    %190 = vmatprep.subr.mxu0 0.0
    %191 = vmatpush1.msra.mxu0 0.0
    %192 = vmatprep.subr.mxu0 0.0
    %193 = vmatpush1.msra.mxu0 0.0
    %194 = vmatprep.subr.mxu0 0.0
    %195 = vmatpush1.msra.mxu0 0.0
    %196 = vmatprep.mubr.f32.mxu0 0.0
    %197 = vmatmul.mubr.f32.gmra.mrb[0].mxu0 %v101
    %v198 = vpop.f32.mrb[0].mxu0
    %v199 = vadd.f32 %v130, %v198
    %v200 = vpop.f32.mrb[0].mxu0
    %201 = vmatprep.mubr.f32.mxu0 0.0
    %202 = vmatmul.mubr.f32.gmra.mrb[0].mxu0 %v102
    %v203 = vpop.f32.mrb[0].mxu0
    %v204 = vadd.f32 %v130, %v203
    %v205 = vpop.f32.mrb[0].mxu0
    %206 = vmatprep.mubr.f32.mxu0 0.0
    %207 = vmatmul.mubr.f32.gmra.mrb[0].mxu0 %v103
    %v208 = vpop.f32.mrb[0].mxu0
    %v209 = vadd.f32 %v130, %v208
    %v210 = vpop.f32.mrb[0].mxu0
    %211 = vmatprep.mubr.f32.mxu0 0.0
    %212 = vmatmul.mubr.f32.gmra.mrb[0].mxu0 %v104
    %v213 = vpop.f32.mrb[0].mxu0
    %v214 = vadd.f32 %v130, %v213
    %v215 = vpop.f32.mrb[0].mxu0
    %216 = vmatprep.mubr.f32.mxu0 0.0
    %217 = vmatmul.mubr.f32.gmra.mrb[0].mxu0 %v105
    %v218 = vpop.f32.mrb[0].mxu0
    %v219 = vadd.f32 %v130, %v218
    %v220 = vpop.f32.mrb[0].mxu0
    %221 = vmatprep.mubr.f32.mxu0 0.0
    %222 = vmatmul.mubr.f32.gmra.mrb[0].mxu0 %v106
    %v223 = vpop.f32.mrb[0].mxu0
    %v224 = vadd.f32 %v130, %v223
    %v225 = vpop.f32.mrb[0].mxu0
    %226 = vmatprep.mubr.f32.mxu0 0.0
    %227 = vmatmul.mubr.f32.gmra.mrb[0].mxu0 %v107
    %v228 = vpop.f32.mrb[0].mxu0
    %v229 = vadd.f32 %v130, %v228
    %v230 = vpop.f32.mrb[0].mxu0
    %231 = vmatprep.mubr.f32.mxu0 0.0
    %232 = vmatmul.mubr.f32.gmra.mrb[0].mxu0 %v108
    %v233 = vpop.f32.mrb[0].mxu0
    %v234 = vadd.f32 %v130, %v233
    %v235 = vpop.f32.mrb[0].mxu0
    %236 = vdwg.mxu0
    %v237 = vmax.f32 %v199, 0.0
    %v238 = vmax.f32 %v204, 0.0
    %v239 = vmax.f32 %v209, 0.0
    %v240 = vmax.f32 %v214, 0.0
    %v241 = vmax.f32 %v219, 0.0
    %v242 = vmax.f32 %v224, 0.0
    %v243 = vmax.f32 %v229, 0.0
    %v244 = vmax.f32 %v234, 0.0
    %v245 = vld [vmem:[#allocation7] sm:$0xff]
    %v246 = vld [vmem:[#allocation7 + $0x8] sm:$0xff]
    %v247 = vld [vmem:[#allocation7 + $0x10] sm:$0xff]
    %v248 = vld [vmem:[#allocation7 + $0x18] sm:$0xff]
    %v249 = vld [vmem:[#allocation7 + $0x20] sm:$0xff]
    %v250 = vld [vmem:[#allocation7 + $0x28] sm:$0xff]
    %v251 = vld [vmem:[#allocation7 + $0x30] sm:$0xff]
    %v252 = vld [vmem:[#allocation7 + $0x38] sm:$0xff]
    %v253 = vld [vmem:[#allocation7 + $0x40] sm:$0xff]
    %v254 = vld [vmem:[#allocation7 + $0x48] sm:$0xff]
    %v255 = vld [vmem:[#allocation7 + $0x50] sm:$0xff]
    %v256 = vld [vmem:[#allocation7 + $0x58] sm:$0xff]
    %v257 = vld [vmem:[#allocation7 + $0x60] sm:$0xff]
    %v258 = vld [vmem:[#allocation7 + $0x68] sm:$0xff]
    %v259 = vld [vmem:[#allocation7 + $0x70] sm:$0xff]
    %v260 = vld [vmem:[#allocation7 + $0x78] sm:$0xff]
    %v261 = vld [vmem:[%s4] sm:$0x1]
    %v263 = vlaneseq
    %v264 = vshrl.u32 %v263, 7
    %v265 = vsub.s32 0, %v264
    %v266 = vrot.slane %v261, %v265
    %268 = vmatprep.subr.mxu0 0.0
    %269 = vmatpush1.msra.mxu0 %v245
    %270 = vmatprep.subr.mxu0 0.0
    %271 = vmatpush1.msra.mxu0 %v246
    %272 = vmatprep.subr.mxu0 0.0
    %273 = vmatpush1.msra.mxu0 %v247
    %274 = vmatprep.subr.mxu0 0.0
    %275 = vmatpush1.msra.mxu0 %v248
    %276 = vmatprep.subr.mxu0 0.0
    %277 = vmatpush1.msra.mxu0 %v249
    %278 = vmatprep.subr.mxu0 0.0
    %279 = vmatpush1.msra.mxu0 %v250
    %280 = vmatprep.subr.mxu0 0.0
    %281 = vmatpush1.msra.mxu0 %v251
    %282 = vmatprep.subr.mxu0 0.0
    %283 = vmatpush1.msra.mxu0 %v252
    %284 = vmatprep.subr.mxu0 0.0
    %285 = vmatpush1.msra.mxu0 %v253
    %286 = vmatprep.subr.mxu0 0.0
    %287 = vmatpush1.msra.mxu0 %v254
    %288 = vmatprep.subr.mxu0 0.0
    %289 = vmatpush1.msra.mxu0 %v255
    %290 = vmatprep.subr.mxu0 0.0
    %291 = vmatpush1.msra.mxu0 %v256
    %292 = vmatprep.subr.mxu0 0.0
    %293 = vmatpush1.msra.mxu0 %v257
    %294 = vmatprep.subr.mxu0 0.0
    %295 = vmatpush1.msra.mxu0 %v258
    %296 = vmatprep.subr.mxu0 0.0
    %297 = vmatpush1.msra.mxu0 %v259
    %298 = vmatprep.subr.mxu0 0.0
    %299 = vmatpush1.msra.mxu0 %v260
    %300 = vmatprep.subr.mxu0 0.0
    %301 = vmatpush1.msra.mxu0 0.0
    %302 = vmatprep.subr.mxu0 0.0
    %303 = vmatpush1.msra.mxu0 0.0
    %304 = vmatprep.subr.mxu0 0.0
    %305 = vmatpush1.msra.mxu0 0.0
    %306 = vmatprep.subr.mxu0 0.0
    %307 = vmatpush1.msra.mxu0 0.0
    %308 = vmatprep.subr.mxu0 0.0
    %309 = vmatpush1.msra.mxu0 0.0
    %310 = vmatprep.subr.mxu0 0.0
    %311 = vmatpush1.msra.mxu0 0.0
    %312 = vmatprep.subr.mxu0 0.0
    %313 = vmatpush1.msra.mxu0 0.0
    %314 = vmatprep.subr.mxu0 0.0
    %315 = vmatpush1.msra.mxu0 0.0
    %316 = vmatprep.subr.mxu0 0.0
    %317 = vmatpush1.msra.mxu0 0.0
    %318 = vmatprep.subr.mxu0 0.0
    %319 = vmatpush1.msra.mxu0 0.0
    %320 = vmatprep.subr.mxu0 0.0
    %321 = vmatpush1.msra.mxu0 0.0
    %322 = vmatprep.subr.mxu0 0.0
    %323 = vmatpush1.msra.mxu0 0.0
    %324 = vmatprep.subr.mxu0 0.0
    %325 = vmatpush1.msra.mxu0 0.0
    %326 = vmatprep.subr.mxu0 0.0
    %327 = vmatpush1.msra.mxu0 0.0
    %328 = vmatprep.subr.mxu0 0.0
    %329 = vmatpush1.msra.mxu0 0.0
    %330 = vmatprep.subr.mxu0 0.0
    %331 = vmatpush1.msra.mxu0 0.0
    %332 = vmatprep.mubr.f32.mxu0 0.0
    %333 = vmatmul.mubr.f32.gmra.mrb[0].mxu0 %v237
    %v334 = vpop.f32.mrb[0].mxu0
    %v335 = vadd.f32 %v266, %v334
    %v336 = vpop.f32.mrb[0].mxu0
    %337 = vmatprep.mubr.f32.mxu0 0.0
    %338 = vmatmul.mubr.f32.gmra.mrb[0].mxu0 %v238
    %v339 = vpop.f32.mrb[0].mxu0
    %v340 = vadd.f32 %v266, %v339
    %v341 = vpop.f32.mrb[0].mxu0
    %342 = vmatprep.mubr.f32.mxu0 0.0
    %343 = vmatmul.mubr.f32.gmra.mrb[0].mxu0 %v239
    %v344 = vpop.f32.mrb[0].mxu0
    %v345 = vadd.f32 %v266, %v344
    %v346 = vpop.f32.mrb[0].mxu0
    %347 = vmatprep.mubr.f32.mxu0 0.0
    %348 = vmatmul.mubr.f32.gmra.mrb[0].mxu0 %v240
    %v349 = vpop.f32.mrb[0].mxu0
    %v350 = vadd.f32 %v266, %v349
    %v351 = vpop.f32.mrb[0].mxu0
    %352 = vmatprep.mubr.f32.mxu0 0.0
    %353 = vmatmul.mubr.f32.gmra.mrb[0].mxu0 %v241
    %v354 = vpop.f32.mrb[0].mxu0
    %v355 = vadd.f32 %v266, %v354
    %v356 = vpop.f32.mrb[0].mxu0
    %357 = vmatprep.mubr.f32.mxu0 0.0
    %358 = vmatmul.mubr.f32.gmra.mrb[0].mxu0 %v242
    %v359 = vpop.f32.mrb[0].mxu0
    %v360 = vadd.f32 %v266, %v359
    %v361 = vpop.f32.mrb[0].mxu0
    %362 = vmatprep.mubr.f32.mxu0 0.0
    %363 = vmatmul.mubr.f32.gmra.mrb[0].mxu0 %v243
    %v364 = vpop.f32.mrb[0].mxu0
    %v365 = vadd.f32 %v266, %v364
    %v366 = vpop.f32.mrb[0].mxu0
    %367 = vmatprep.mubr.f32.mxu0 0.0
    %368 = vmatmul.mubr.f32.gmra.mrb[0].mxu0 %v244
    %v369 = vpop.f32.mrb[0].mxu0
    %v370 = vadd.f32 %v266, %v369
    %v371 = vpop.f32.mrb[0].mxu0
    %372 = vdwg.mxu0
    %v373 = vmax.f32 %v335, 0.0
    %v374 = vmax.f32 %v340, 0.0
    %v375 = vmax.f32 %v345, 0.0
    %v376 = vmax.f32 %v350, 0.0
    %v377 = vmax.f32 %v355, 0.0
    %v378 = vmax.f32 %v360, 0.0
    %v379 = vmax.f32 %v365, 0.0
    %v380 = vmax.f32 %v370, 0.0
    %v381 = vrot.slane %v373, 4
    %v382 = vadd.f32 %v373, %v381
    %v383 = vrot.slane %v382, 2
    %v384 = vadd.f32 %v382, %v383
    %v385 = vrot.slane %v384, 1
    %v386 = vadd.f32 %v384, %v385
    %v387 = vrot.slane %v374, 4
    %v388 = vadd.f32 %v374, %v387
    %v389 = vrot.slane %v388, 2
    %v390 = vadd.f32 %v388, %v389
    %v391 = vrot.slane %v390, 1
    %v392 = vadd.f32 %v390, %v391
    %v393 = vrot.slane %v375, 4
    %v394 = vadd.f32 %v375, %v393
    %v395 = vrot.slane %v394, 2
    %v396 = vadd.f32 %v394, %v395
    %v397 = vrot.slane %v396, 1
    %v398 = vadd.f32 %v396, %v397
    %v399 = vrot.slane %v376, 4
    %v400 = vadd.f32 %v376, %v399
    %v401 = vrot.slane %v400, 2
    %v402 = vadd.f32 %v400, %v401
    %v403 = vrot.slane %v402, 1
    %v404 = vadd.f32 %v402, %v403
    %v405 = vrot.slane %v377, 4
    %v406 = vadd.f32 %v377, %v405
    %v407 = vrot.slane %v406, 2
    %v408 = vadd.f32 %v406, %v407
    %v409 = vrot.slane %v408, 1
    %v410 = vadd.f32 %v408, %v409
    %v411 = vrot.slane %v378, 4
    %v412 = vadd.f32 %v378, %v411
    %v413 = vrot.slane %v412, 2
    %v414 = vadd.f32 %v412, %v413
    %v415 = vrot.slane %v414, 1
    %v416 = vadd.f32 %v414, %v415
    %v417 = vrot.slane %v379, 4
    %v418 = vadd.f32 %v379, %v417
    %v419 = vrot.slane %v418, 2
    %v420 = vadd.f32 %v418, %v419
    %v421 = vrot.slane %v420, 1
    %v422 = vadd.f32 %v420, %v421
    %v423 = vrot.slane %v380, 4
    %v424 = vadd.f32 %v380, %v423
    %v425 = vrot.slane %v424, 2
    %v426 = vadd.f32 %v424, %v425
    %v427 = vrot.slane %v426, 1
    %v428 = vadd.f32 %v426, %v427
    %v429 = vmul.f32 %v386, 0.125
    %v430 = vmul.f32 %v392, 0.125
    %v431 = vmul.f32 %v398, 0.125
    %v432 = vmul.f32 %v404, 0.125
    %v433 = vmul.f32 %v410, 0.125
    %v434 = vmul.f32 %v416, 0.125
    %v435 = vmul.f32 %v422, 0.125
    %v436 = vmul.f32 %v428, 0.125
    %v437 = vld [vmem:[#allocation8] sm:$0xff]
    %v438 = vld [vmem:[#allocation8 + $0x8] sm:$0xff]
    %v439 = vld [vmem:[#allocation8 + $0x10] sm:$0xff]
    %v440 = vld [vmem:[#allocation8 + $0x18] sm:$0xff]
    %v441 = vld [vmem:[#allocation8 + $0x20] sm:$0xff]
    %v442 = vld [vmem:[#allocation8 + $0x28] sm:$0xff]
    %v443 = vld [vmem:[#allocation8 + $0x30] sm:$0xff]
    %v444 = vld [vmem:[#allocation8 + $0x38] sm:$0xff]
    %v445 = vld [vmem:[#allocation8 + $0x40] sm:$0xff]
    %v446 = vld [vmem:[#allocation8 + $0x48] sm:$0xff]
    %v447 = vld [vmem:[#allocation8 + $0x50] sm:$0xff]
    %v448 = vld [vmem:[#allocation8 + $0x58] sm:$0xff]
    %v449 = vld [vmem:[#allocation8 + $0x60] sm:$0xff]
    %v450 = vld [vmem:[#allocation8 + $0x68] sm:$0xff]
    %v451 = vld [vmem:[#allocation8 + $0x70] sm:$0xff]
    %v452 = vld [vmem:[#allocation8 + $0x78] sm:$0xff]
    %v453 = vld [vmem:[#allocation8 + $0x80] sm:$0xff]
    %v454 = vld [vmem:[#allocation8 + $0x88] sm:$0xff]
    %v455 = vld [vmem:[#allocation8 + $0x90] sm:$0xff]
    %v456 = vld [vmem:[#allocation8 + $0x98] sm:$0xff]
    %v457 = vld [vmem:[#allocation8 + $0xa0] sm:$0xff]
    %v458 = vld [vmem:[#allocation8 + $0xa8] sm:$0xff]
    %v459 = vld [vmem:[#allocation8 + $0xb0] sm:$0xff]
    %v460 = vld [vmem:[#allocation8 + $0xb8] sm:$0xff]
    %v461 = vld [vmem:[#allocation8 + $0xc0] sm:$0xff]
    %v462 = vld [vmem:[#allocation8 + $0xc8] sm:$0xff]
    %v463 = vld [vmem:[#allocation8 + $0xd0] sm:$0xff]
    %v464 = vld [vmem:[#allocation8 + $0xd8] sm:$0xff]
    %v465 = vld [vmem:[#allocation8 + $0xe0] sm:$0xff]
    %v466 = vld [vmem:[#allocation8 + $0xe8] sm:$0xff]
    %v467 = vld [vmem:[#allocation8 + $0xf0] sm:$0xff]
    %v468 = vld [vmem:[#allocation8 + $0xf8] sm:$0xff]
    %v469 = vld [vmem:[%s6] sm:$0x3]
    %v470 = vld [vmem:[#allocation10] sm:$0xff]
    %v471 = vld [vmem:[#allocation10 + $0x8] sm:$0xff]
    %v472 = vld [vmem:[#allocation10 + $0x10] sm:$0xff]
    %v473 = vld [vmem:[#allocation10 + $0x18] sm:$0xff]
    %v474 = vld [vmem:[#allocation10 + $0x20] sm:$0xff]
    %v475 = vld [vmem:[#allocation10 + $0x28] sm:$0xff]
    %v476 = vld [vmem:[#allocation10 + $0x30] sm:$0xff]
    %v477 = vld [vmem:[#allocation10 + $0x38] sm:$0xff]
    %v478 = vld [vmem:[#allocation10 + $0x40] sm:$0xff]
    %v479 = vld [vmem:[#allocation10 + $0x48] sm:$0xff]
    %v480 = vld [vmem:[#allocation10 + $0x50] sm:$0xff]
    %v481 = vld [vmem:[#allocation10 + $0x58] sm:$0xff]
    %v482 = vld [vmem:[#allocation10 + $0x60] sm:$0xff]
    %v483 = vld [vmem:[#allocation10 + $0x68] sm:$0xff]
    %v484 = vld [vmem:[#allocation10 + $0x70] sm:$0xff]
    %v485 = vld [vmem:[#allocation10 + $0x78] sm:$0xff]
    %v486 = vld [vmem:[#allocation10 + $0x80] sm:$0xff]
    %v487 = vld [vmem:[#allocation10 + $0x88] sm:$0xff]
    %v488 = vld [vmem:[#allocation10 + $0x90] sm:$0xff]
    %v489 = vld [vmem:[#allocation10 + $0x98] sm:$0xff]
    %v490 = vld [vmem:[#allocation10 + $0xa0] sm:$0xff]
    %v491 = vld [vmem:[#allocation10 + $0xa8] sm:$0xff]
    %v492 = vld [vmem:[#allocation10 + $0xb0] sm:$0xff]
    %v493 = vld [vmem:[#allocation10 + $0xb8] sm:$0xff]
    %v494 = vld [vmem:[#allocation10 + $0xc0] sm:$0xff]
    %v495 = vld [vmem:[#allocation10 + $0xc8] sm:$0xff]
    %v496 = vld [vmem:[#allocation10 + $0xd0] sm:$0xff]
    %v497 = vld [vmem:[#allocation10 + $0xd8] sm:$0xff]
    %v498 = vld [vmem:[#allocation10 + $0xe0] sm:$0xff]
    %v499 = vld [vmem:[#allocation10 + $0xe8] sm:$0xff]
    %v500 = vld [vmem:[#allocation10 + $0xf0] sm:$0xff]
    %v501 = vld [vmem:[#allocation10 + $0xf8] sm:$0xff]
    %v502 = vld [vmem:[%s8] sm:$0x1]
    %v504 = vlaneseq
    %v505 = vshrl.u32 %v504, 7
    %v506 = vsub.s32 0, %v505
    %v507 = vrot.slane %v469, %v506
    %v508 = vlaneseq
    %v509 = vshrl.u32 %v508, 7
    %v510 = vsub.s32 1, %v509
    %v511 = vrot.slane %v469, %v510
    %vm522 = vcmask 1041409
    %v523 = vsel %vm522, %v430, %v429
    %vm524 = vcmask 1042434
    %v525 = vsel %vm524, %v431, %v523
    %vm526 = vcmask 1043459
    %v527 = vsel %vm526, %v432, %v525
    %vm528 = vcmask 1044484
    %v529 = vsel %vm528, %v433, %v527
    %vm530 = vcmask 1045509
    %v531 = vsel %vm530, %v434, %v529
    %vm532 = vcmask 1046534
    %v533 = vsel %vm532, %v435, %v531
    %vm534 = vcmask 1047559
    %v535 = vsel %vm534, %v436, %v533
    %537 = vmatprep.subr.mxu0 %v438
    %538 = vmatpush1.msra.mxu0 %v437
    %539 = vmatprep.subr.mxu0 %v440
    %540 = vmatpush1.msra.mxu0 %v439
    %541 = vmatprep.subr.mxu0 %v442
    %542 = vmatpush1.msra.mxu0 %v441
    %543 = vmatprep.subr.mxu0 %v444
    %544 = vmatpush1.msra.mxu0 %v443
    %545 = vmatprep.subr.mxu0 %v446
    %546 = vmatpush1.msra.mxu0 %v445
    %547 = vmatprep.subr.mxu0 %v448
    %548 = vmatpush1.msra.mxu0 %v447
    %549 = vmatprep.subr.mxu0 %v450
    %550 = vmatpush1.msra.mxu0 %v449
    %551 = vmatprep.subr.mxu0 %v452
    %552 = vmatpush1.msra.mxu0 %v451
    %553 = vmatprep.subr.mxu0 %v454
    %554 = vmatpush1.msra.mxu0 %v453
    %555 = vmatprep.subr.mxu0 %v456
    %556 = vmatpush1.msra.mxu0 %v455
    %557 = vmatprep.subr.mxu0 %v458
    %558 = vmatpush1.msra.mxu0 %v457
    %559 = vmatprep.subr.mxu0 %v460
    %560 = vmatpush1.msra.mxu0 %v459
    %561 = vmatprep.subr.mxu0 %v462
    %562 = vmatpush1.msra.mxu0 %v461
    %563 = vmatprep.subr.mxu0 %v464
    %564 = vmatpush1.msra.mxu0 %v463
    %565 = vmatprep.subr.mxu0 %v466
    %566 = vmatpush1.msra.mxu0 %v465
    %567 = vmatprep.subr.mxu0 %v468
    %568 = vmatpush1.msra.mxu0 %v467
    %569 = vmatprep.subr.mxu0 0.0
    %570 = vmatpush1.msra.mxu0 0.0
    %571 = vmatprep.subr.mxu0 0.0
    %572 = vmatpush1.msra.mxu0 0.0
    %573 = vmatprep.subr.mxu0 0.0
    %574 = vmatpush1.msra.mxu0 0.0
    %575 = vmatprep.subr.mxu0 0.0
    %576 = vmatpush1.msra.mxu0 0.0
    %577 = vmatprep.subr.mxu0 0.0
    %578 = vmatpush1.msra.mxu0 0.0
    %579 = vmatprep.subr.mxu0 0.0
    %580 = vmatpush1.msra.mxu0 0.0
    %581 = vmatprep.subr.mxu0 0.0
    %582 = vmatpush1.msra.mxu0 0.0
    %583 = vmatprep.subr.mxu0 0.0
    %584 = vmatpush1.msra.mxu0 0.0
    %585 = vmatprep.subr.mxu0 0.0
    %586 = vmatpush1.msra.mxu0 0.0
    %587 = vmatprep.subr.mxu0 0.0
    %588 = vmatpush1.msra.mxu0 0.0
    %589 = vmatprep.subr.mxu0 0.0
    %590 = vmatpush1.msra.mxu0 0.0
    %591 = vmatprep.subr.mxu0 0.0
    %592 = vmatpush1.msra.mxu0 0.0
    %593 = vmatprep.subr.mxu0 0.0
    %594 = vmatpush1.msra.mxu0 0.0
    %595 = vmatprep.subr.mxu0 0.0
    %596 = vmatpush1.msra.mxu0 0.0
    %597 = vmatprep.subr.mxu0 0.0
    %598 = vmatpush1.msra.mxu0 0.0
    %599 = vmatprep.subr.mxu0 0.0
    %600 = vmatpush1.msra.mxu0 0.0
    %601 = vmatprep.mubr.f32.mxu0 0.0
    %602 = vmatmul.mubr.f32.gmra.mrb[0].mxu0 %v535
    %v603 = vpop.f32.mrb[0].mxu0
    %v604 = vadd.f32 %v507, %v603
    %v605 = vpop.f32.mrb[0].mxu0
    %v606 = vadd.f32 %v511, %v605
    %607 = vdwg.mxu0
    %v608 = vmax.f32 %v604, 0.0
    %v609 = vmax.f32 %v606, 0.0
    %v611 = vlaneseq
    %v612 = vshrl.u32 %v611, 7
    %v613 = vsub.s32 0, %v612
    %v614 = vrot.slane %v502, %v613
    %616 = vmatprep.subr.mxu0 0.0
    %617 = vmatpush1.msra.mxu0 %v470
    %618 = vmatprep.subr.mxu0 0.0
    %619 = vmatpush1.msra.mxu0 %v471
    %620 = vmatprep.subr.mxu0 0.0
    %621 = vmatpush1.msra.mxu0 %v472
    %622 = vmatprep.subr.mxu0 0.0
    %623 = vmatpush1.msra.mxu0 %v473
    %624 = vmatprep.subr.mxu0 0.0
    %625 = vmatpush1.msra.mxu0 %v474
    %626 = vmatprep.subr.mxu0 0.0
    %627 = vmatpush1.msra.mxu0 %v475
    %628 = vmatprep.subr.mxu0 0.0
    %629 = vmatpush1.msra.mxu0 %v476
    %630 = vmatprep.subr.mxu0 0.0
    %631 = vmatpush1.msra.mxu0 %v477
    %632 = vmatprep.subr.mxu0 0.0
    %633 = vmatpush1.msra.mxu0 %v478
    %634 = vmatprep.subr.mxu0 0.0
    %635 = vmatpush1.msra.mxu0 %v479
    %636 = vmatprep.subr.mxu0 0.0
    %637 = vmatpush1.msra.mxu0 %v480
    %638 = vmatprep.subr.mxu0 0.0
    %639 = vmatpush1.msra.mxu0 %v481
    %640 = vmatprep.subr.mxu0 0.0
    %641 = vmatpush1.msra.mxu0 %v482
    %642 = vmatprep.subr.mxu0 0.0
    %643 = vmatpush1.msra.mxu0 %v483
    %644 = vmatprep.subr.mxu0 0.0
    %645 = vmatpush1.msra.mxu0 %v484
    %646 = vmatprep.subr.mxu0 0.0
    %647 = vmatpush1.msra.mxu0 %v485
    %648 = vmatprep.subr.mxu0 0.0
    %649 = vmatpush1.msra.mxu0 %v486
    %650 = vmatprep.subr.mxu0 0.0
    %651 = vmatpush1.msra.mxu0 %v487
    %652 = vmatprep.subr.mxu0 0.0
    %653 = vmatpush1.msra.mxu0 %v488
    %654 = vmatprep.subr.mxu0 0.0
    %655 = vmatpush1.msra.mxu0 %v489
    %656 = vmatprep.subr.mxu0 0.0
    %657 = vmatpush1.msra.mxu0 %v490
    %658 = vmatprep.subr.mxu0 0.0
    %659 = vmatpush1.msra.mxu0 %v491
    %660 = vmatprep.subr.mxu0 0.0
    %661 = vmatpush1.msra.mxu0 %v492
    %662 = vmatprep.subr.mxu0 0.0
    %663 = vmatpush1.msra.mxu0 %v493
    %664 = vmatprep.subr.mxu0 0.0
    %665 = vmatpush1.msra.mxu0 %v494
    %666 = vmatprep.subr.mxu0 0.0
    %667 = vmatpush1.msra.mxu0 %v495
    %668 = vmatprep.subr.mxu0 0.0
    %669 = vmatpush1.msra.mxu0 %v496
    %670 = vmatprep.subr.mxu0 0.0
    %671 = vmatpush1.msra.mxu0 %v497
    %672 = vmatprep.subr.mxu0 0.0
    %673 = vmatpush1.msra.mxu0 %v498
    %674 = vmatprep.subr.mxu0 0.0
    %675 = vmatpush1.msra.mxu0 %v499
    %676 = vmatprep.subr.mxu0 0.0
    %677 = vmatpush1.msra.mxu0 %v500
    %678 = vmatprep.subr.mxu0 0.0
    %679 = vmatpush1.msra.mxu0 %v501
    %680 = vmatprep.mubr.f32.mxu0 %v609
    %681 = vmatmul.mubr.f32.gmra.mrb[0].mxu0 %v608
    %v682 = vpop.f32.mrb[0].mxu0
    %v683 = vadd.f32 %v614, %v682
    %v684 = vpop.f32.mrb[0].mxu0
    %685 = vdwg.mxu0
    %686 = vst [vmem:[#allocation11] sm:$0xff] %v683
    // Predicated region
    $region58: #{tpu_custom_call.1} parent=1 // pred_check
      _
    $region59: #{tpu_custom_call.1} parent=1 // pred_check_branch
      %688 = sbr.rel (0) target = $region61
    $region60: #{tpu_custom_call.1} parent=1 // pred_region
      %s690 = ssub.s32 128, 128
      %691 = vsyncadd [#allocation4], %s690
      %s693 = sshll.u32 [#allocation11], 4
      %s694 = int_to_ptr.vmem [resolvable:$true] %s693
      %696 = dma.vmem_to_hbm [thread:$0]  %s694, 128, %s9, [#allocation4]
    $region61: #{tpu_custom_call.1} parent=1 // pred_fallthru
      _
    // Predicated region
    $region62: #{tpu_custom_call.1} parent=1 // pred_check
      _
    $region63: #{tpu_custom_call.1} parent=1 // pred_check_branch
      %698 = sbr.rel (0) target = $region65
    $region64: #{tpu_custom_call.1} parent=1 // pred_region
      %699 = dma.done [#allocation4], 128
    $region65: #{tpu_custom_call.1} parent=1 // pred_fallthru
      _
    %700 = vsyncpa [#allocation3], 1
    %701 = vsyncpa [#allocation6], 1
    %702 = vsyncpa [#allocation9], 1
    %703 = vsyncpa [#allocation4], 1

</llo_original>
